<compile_context>
chip_gen: v6e
topology: v6e:2x2x1
jax: 0.10.0
libtpu: 0.0.40
codegen_flags: <defaults>
</compile_context>

<pallas_src>
import jax
import jax.numpy as jnp
from jax.experimental import pallas as pl
from jax.experimental.pallas import tpu as pltpu

OUT_DIM = 4 * 2      # theta: 4 parts x 2 coords
OUT_PAD = 128        # lane-dense padded output width (tanh(0)=0 in padding)


def _round_up(x, m):
    return ((x + m - 1) // m) * m


def hard_attn_kernel(x_ref, w_ref, b_ref, out_ref, acc_ref):
    # x_ref  : (TN, C, THW)  zero-padded spatial chunk (lane dim = HW)
    # w_ref  : (C, OUT_PAD)  fc weight in matmul layout, 1/(H*W) folded in,
    #                        zero-padded to 128 output lanes
    # b_ref  : (1, OUT_PAD)  fc bias, zero-padded
    # out_ref: (TN, OUT_PAD) padded theta (before reshape to (N, 4, 2))
    # acc_ref: (TN, C) f32 scratch accumulator of partial spatial sums
    hw_step = pl.program_id(1)

    @pl.when(hw_step == 0)
    def _init():
        acc_ref[...] = jnp.zeros_like(acc_ref)

    # Accumulate partial spatial sums (the mean's 1/(H*W) lives in w_ref).
    acc_ref[...] += jnp.sum(x_ref[...], axis=-1).astype(jnp.float32)

    @pl.when(hw_step == pl.num_programs(1) - 1)
    def _finalize():
        theta = jnp.dot(acc_ref[...], w_ref[...],
                        preferred_element_type=jnp.float32) + b_ref[...]
        out_ref[...] = jnp.tanh(theta).astype(out_ref.dtype)


def hard_attn(x_nchw, fc_weight, fc_bias, *, tn_max=8, thw_target=512):
    """HardAttn forward.

    x_nchw:    (N, C, H, W) float32
    fc_weight: (8, C)  torch nn.Linear layout (out_features, in_features)
    fc_bias:   (8,)
    returns:   (N, 4, 2) theta
    """
    N, C, H, W = x_nchw.shape
    HW = H * W
    x_flat = x_nchw.reshape(N, C, HW)

    # ---- spatial (lane) tiling: lane-aligned chunks, zero-pad the tail ----
    hw_pad = _round_up(HW, 128)
    thw = min(thw_target, hw_pad)
    hw_pad = _round_up(hw_pad, thw)

    # ---- batch tiling (parallel axis for megacore) ----
    tn = N if N < tn_max else tn_max
    n_pad = _round_up(N, tn)

    if n_pad != N or hw_pad != HW:
        x_flat = jnp.pad(x_flat, ((0, n_pad - N), (0, 0), (0, hw_pad - HW)))

    # Fold the global-average 1/(H*W) into the weight; pad to 128 out lanes.
    w_mat = (fc_weight.T / float(HW)).astype(jnp.float32)          # (C, 8)
    w_mat = jnp.pad(w_mat, ((0, 0), (0, OUT_PAD - OUT_DIM)))       # (C, 128)
    b_vec = jnp.pad(fc_bias.astype(jnp.float32),
                    (0, OUT_PAD - OUT_DIM)).reshape(1, OUT_PAD)    # (1, 128)

    grid = (n_pad // tn, hw_pad // thw)

    # VMEM budget: double-buffered x chunks dominate; add headroom, cap at
    # v7x's 64 MiB physical VMEM.
    vmem_needed = (2 * tn * C * thw * 4
                   + 2 * (C * OUT_PAD + OUT_PAD) * 4
                   + 2 * tn * OUT_PAD * 4
                   + tn * C * 4)
    vmem_limit = min(max(2 * vmem_needed, 4 * 1024 * 1024), 64 * 1024 * 1024)

    cost = pl.CostEstimate(
        flops=int(n_pad * C * hw_pad + 2 * n_pad * C * OUT_DIM + n_pad * OUT_DIM),
        transcendentals=int(n_pad * OUT_DIM),
        bytes_accessed=int(4 * (n_pad * C * hw_pad + C * OUT_PAD + OUT_PAD
                                + n_pad * OUT_PAD)),
    )

    out_padded = pl.pallas_call(
        hard_attn_kernel,
        out_shape=jax.ShapeDtypeStruct((n_pad, OUT_PAD), jnp.float32),
        grid_spec=pltpu.PrefetchScalarGridSpec(
            num_scalar_prefetch=0,
            grid=grid,
            in_specs=[
                pl.BlockSpec((tn, C, thw), lambda i, j: (i, 0, j)),
                pl.BlockSpec((C, OUT_PAD), lambda i, j: (0, 0)),   # resident
                pl.BlockSpec((1, OUT_PAD), lambda i, j: (0, 0)),   # resident
            ],
            out_specs=pl.BlockSpec((tn, OUT_PAD), lambda i, j: (i, 0)),
            scratch_shapes=[pltpu.VMEM((tn, C), jnp.float32)],
        ),
        compiler_params=pltpu.CompilerParams(
            dimension_semantics=("parallel", "arbitrary"),
            vmem_limit_bytes=int(vmem_limit),
        ),
        cost_estimate=cost,
    )(x_flat, w_mat, b_vec)

    theta = out_padded[:N, :OUT_DIM].reshape(N, 4, 2)
    return theta


def hard_attn_reference(x_nchw, fc_weight, fc_bias):
    """Pure-JAX reference (same math, no Pallas)."""
    pooled = jnp.mean(x_nchw, axis=(2, 3))                          # (N, C)
    theta = jnp.tanh(pooled @ fc_weight.T + fc_bias)
    return theta.reshape(-1, 4, 2)


def default_init_params(in_channels):
    """Exact init of the PyTorch module: zero weight, fixed bias."""
    w = jnp.zeros((OUT_DIM, in_channels), jnp.float32)
    b = jnp.array([0, -0.75, 0, -0.25, 0, 0.25, 0, 0.75], jnp.float32)
    return w, b


if __name__ == "__main__":
    key = jax.random.PRNGKey(0)

    # Case 1: module's default init (zero weight, fixed bias), small shapes.
    N, C, H, W = 2, 16, 16, 16
    k1, k2, k3, k4 = jax.random.split(key, 4)
    x = jax.random.normal(k1, (N, C, H, W), jnp.float32)
    w0, b0 = default_init_params(C)
    out = jax.block_until_ready(hard_attn(x, w0, b0))
    ref = hard_attn_reference(x, w0, b0)
    assert out.shape == (N, 4, 2)
    assert jnp.allclose(out, ref, atol=1e-5, rtol=1e-5), "case1 mismatch"

    # Case 2: random nonzero fc params, non-128-aligned spatial size
    # (exercises HW zero-padding path).
    N2, C2, H2, W2 = 3, 16, 7, 9
    x2 = jax.random.normal(k2, (N2, C2, H2, W2), jnp.float32)
    w2 = 0.1 * jax.random.normal(k3, (OUT_DIM, C2), jnp.float32)
    b2 = 0.1 * jax.random.normal(k4, (OUT_DIM,), jnp.float32)
    out2 = jax.block_until_ready(hard_attn(x2, w2, b2))
    ref2 = hard_attn_reference(x2, w2, b2)
    assert out2.shape == (N2, 4, 2)
    assert jnp.allclose(out2, ref2, atol=1e-5, rtol=1e-5), "case2 mismatch"

    # Case 3: multiple HW chunks and multiple / padded N tiles
    # (exercises accumulator carry across the 'arbitrary' axis and N padding).
    N3, C3, H3, W3 = 10, 8, 32, 32
    x3 = jax.random.normal(k2, (N3, C3, H3, W3), jnp.float32)
    w3 = 0.1 * jax.random.normal(k3, (OUT_DIM, C3), jnp.float32)
    b3 = 0.1 * jax.random.normal(k4, (OUT_DIM,), jnp.float32)
    out3 = jax.block_until_ready(hard_attn(x3, w3, b3))
    ref3 = hard_attn_reference(x3, w3, b3)
    assert out3.shape == (N3, 4, 2)
    assert jnp.allclose(out3, ref3, atol=1e-5, rtol=1e-5), "case3 mismatch"

    print("KERNEL_OK")
</pallas_src>

<mosaic_0001>
module attributes {stable_mosaic.version = 11 : i64} {
  func.func @hard_attn_kernel(%arg0: i32, %arg1: i32, %arg2: memref<2x16x256xf32, #tpu.memory_space<vmem>>, %arg3: memref<16x128xf32, #tpu.memory_space<vmem>>, %arg4: memref<1x128xf32, #tpu.memory_space<vmem>>, %arg5: memref<2x128xf32, #tpu.memory_space<vmem>>, %arg6: memref<2x16xf32, #tpu.memory_space<vmem>>) attributes {dimension_semantics = [#tpu.dimension_semantics<parallel>, #tpu.dimension_semantics<arbitrary>], iteration_bounds = array<i64: 1, 1>, scalar_prefetch = 0 : i64, scratch_operands = 1 : i64, tpu.core_type = #tpu.core_type<tc>, window_params = [{transform_indices = @transform_0, window_bounds = array<i64: 2, 16, 256>}, {pipeline_mode = #tpu.pipeline_mode<synchronous>, transform_indices = @transform_1, window_bounds = array<i64: 16, 128>}, {pipeline_mode = #tpu.pipeline_mode<synchronous>, transform_indices = @transform_2, window_bounds = array<i64: 1, 128>}, {transform_indices = @transform_3, window_bounds = array<i64: 2, 128>}]} {
    %c0_i32 = arith.constant 0 : i32
    %0 = arith.cmpi eq, %arg1, %c0_i32 : i32
    %1 = arith.extui %0 : i1 to i32
    %c0_i32_0 = arith.constant 0 : i32
    %2 = arith.cmpi ne, %1, %c0_i32_0 : i32
    scf.if %2 {
      %cst_9 = arith.constant 0.000000e+00 : f32
      %11 = vector.broadcast %cst_9 : f32 to vector<2x16xf32>
      %c0_10 = arith.constant 0 : index
      %c0_11 = arith.constant 0 : index
      %12 = vector.load %arg6[%c0_10, %c0_11] : memref<2x16xf32, #tpu.memory_space<vmem>>, vector<2x16xf32>
      tpu.vector_store %arg6[%c0_10, %c0_11], %11 {strides = array<i32>} : memref<2x16xf32, #tpu.memory_space<vmem>>, vector<2x16xf32>,
    } else {
    }
    %c0 = arith.constant 0 : index
    %c0_1 = arith.constant 0 : index
    %3 = vector.load %arg6[%c0, %c0_1] : memref<2x16xf32, #tpu.memory_space<vmem>>, vector<2x16xf32>
    %c0_2 = arith.constant 0 : index
    %c0_3 = arith.constant 0 : index
    %c0_4 = arith.constant 0 : index
    %4 = vector.load %arg2[%c0_2, %c0_3, %c0_4] : memref<2x16x256xf32, #tpu.memory_space<vmem>>, vector<2x16x256xf32>
    %cst = arith.constant dense<0.000000e+00> : vector<2x16xf32>
    %5 = vector.multi_reduction <add>, %4, %cst [2] : vector<2x16x256xf32> to vector<2x16xf32>
    %6 = arith.addf %3, %5 : vector<2x16xf32>
    %c0_5 = arith.constant 0 : index
    %c0_6 = arith.constant 0 : index
    %7 = vector.load %arg6[%c0_5, %c0_6] : memref<2x16xf32, #tpu.memory_space<vmem>>, vector<2x16xf32>
    tpu.vector_store %arg6[%c0_5, %c0_6], %6 {strides = array<i32>} : memref<2x16xf32, #tpu.memory_space<vmem>>, vector<2x16xf32>,
    %c0_i32_7 = arith.constant 0 : i32
    %8 = arith.cmpi eq, %arg1, %c0_i32_7 : i32
    %9 = arith.extui %8 : i1 to i32
    %c0_i32_8 = arith.constant 0 : i32
    %10 = arith.cmpi ne, %9, %c0_i32_8 : i32
    scf.if %10 {
      %c0_9 = arith.constant 0 : index
      %c0_10 = arith.constant 0 : index
      %11 = vector.load %arg6[%c0_9, %c0_10] : memref<2x16xf32, #tpu.memory_space<vmem>>, vector<2x16xf32>
      %c0_11 = arith.constant 0 : index
      %c0_12 = arith.constant 0 : index
      %12 = vector.load %arg3[%c0_11, %c0_12] : memref<16x128xf32, #tpu.memory_space<vmem>>, vector<16x128xf32>
      %cst_13 = arith.constant dense<0.000000e+00> : vector<2x128xf32>
      %13 = tpu.matmul %11, %12, %cst_13 {dimension_numbers = #tpu.dot_dimension_numbers<[1], [0], [0], [1], [0, 0, 1, 1], [], []>} : vector<2x16xf32>, vector<16x128xf32>, vector<2x128xf32> -> vector<2x128xf32>
      %c0_14 = arith.constant 0 : index
      %c0_15 = arith.constant 0 : index
      %14 = vector.load %arg4[%c0_14, %c0_15] : memref<1x128xf32, #tpu.memory_space<vmem>>, vector<1x128xf32>
      %15 = vector.broadcast %14 : vector<1x128xf32> to vector<2x128xf32>
      %16 = arith.addf %13, %15 : vector<2x128xf32>
      %17 = math.tanh %16 : vector<2x128xf32>
      %c0_16 = arith.constant 0 : index
      %c0_17 = arith.constant 0 : index
      %18 = vector.load %arg5[%c0_16, %c0_17] : memref<2x128xf32, #tpu.memory_space<vmem>>, vector<2x128xf32>
      tpu.vector_store %arg5[%c0_16, %c0_17], %17 {strides = array<i32>} : memref<2x128xf32, #tpu.memory_space<vmem>>, vector<2x128xf32>,
    } else {
    }
    return
  }
  func.func @transform_0(%arg0: i32, %arg1: i32) -> (i32, i32, i32) {
    %c0_i32 = arith.constant 0 : i32
    %c0_i32_0 = arith.constant 0 : i32
    return %arg0, %c0_i32, %arg1 : i32, i32, i32
  }
  func.func @transform_1(%arg0: i32, %arg1: i32) -> (i32, i32) {
    %c0_i32 = arith.constant 0 : i32
    %c0_i32_0 = arith.constant 0 : i32
    %c0_i32_1 = arith.constant 0 : i32
    return %c0_i32, %c0_i32_0 : i32, i32
  }
  func.func @transform_2(%arg0: i32, %arg1: i32) -> (i32, i32) {
    %c0_i32 = arith.constant 0 : i32
    %c0_i32_0 = arith.constant 0 : i32
    %c0_i32_1 = arith.constant 0 : i32
    return %c0_i32, %c0_i32_0 : i32, i32
  }
  func.func @transform_3(%arg0: i32, %arg1: i32) -> (i32, i32) {
    %c0_i32 = arith.constant 0 : i32
    %c0_i32_0 = arith.constant 0 : i32
    return %arg0, %c0_i32 : i32, i32
  }
}

</mosaic_0001>

<llo_original>
// kernel: tpu_custom_call.1
$region0: #{tpu_custom_call.1}
  #allocation0 [shape = 'u32[]', space=smem, size = 0x4, offset = 0x4, fixed_abs, tag = 'smem constant byte address 0x4 - core index']
  #allocation1 [shape = 'u32[144,128]{1,0:T(1,128)}', space=vmem, size = 0x12000, scoped, tag = 'internal scratch']
  #allocation2 [shape = 'f32[2,16]{1,0:T(2,128)}', space=vmem, size = 0x400, scoped, tag = 'scratch operand']
  %s0 = inlined_call_operand.hbm [shape: f32[2,16,256], index: 0, kind: input, shape index: {}]
  %s1 = inlined_call_operand.hbm [shape: f32[16,128], index: 1, kind: input, shape index: {}]
  %s2 = inlined_call_operand.vmem [shape: f32[1,128], index: 2, kind: input, shape index: {}]
  %s3 = inlined_call_operand.hbm [shape: f32[2,128], index: 3, kind: output, shape index: {}]
  %s4 = sld [smem:[#allocation0]]
  $region38: #{tpu_custom_call.1} parent=0
    _
  %s6 = ssub.s32 1, %s4
  %s7 = scalar_select 0, %s6, %s4
  $region1: #{tpu_custom_call.1} parent=0
    #allocation3 [shape = 'u8[32768]{0}', space=vmem, size = 0x8000, scoped, tag = 'input window, operand 0, single buffered']
    #allocation4 [shape = 's32[1]{0}', space=sflag, size = 0x4, scoped, tag = 'scoped memory for tpu_custom_call.1']
    #allocation5 [shape = 's32[1]{0}', space=sflag, size = 0x4, scoped, tag = 'scoped memory for tpu_custom_call.1']
    #allocation6 [shape = 'u8[8192]{0}', space=vmem, size = 0x2000, scoped, tag = 'input window, operand 1, single buffered']
    #allocation7 [shape = 's32[1]{0}', space=sflag, size = 0x4, scoped, tag = 'scoped memory for tpu_custom_call.1']
    #allocation8 [shape = 'u8[1024]{0}', space=vmem, size = 0x400, scoped, tag = 'output window, operand 0, single buffered']
    %8 = vsyncpa [#allocation4], 0
    %9 = vsyncpa [#allocation7], 0
    %10 = vsyncpa [#allocation5], 0
    // Predicated region
    $region2: #{tpu_custom_call.1} parent=1 // pred_check
      _
    $region3: #{tpu_custom_call.1} parent=1 // pred_check_branch
      %12 = sbr.rel (0) target = $region5
    $region4: #{tpu_custom_call.1} parent=1 // pred_region
      %s14 = ssub.s32 1024, 1024
      %15 = vsyncadd [#allocation4], %s14
      %s16 = sshll.u32 [#allocation3], 4
      %s17 = int_to_ptr.vmem [resolvable:$true] %s16
      %22 = dma.hbm_to_vmem [thread:$0]  %s0, 1024, %s17, [#allocation4], 256, 256, 16
    $region5: #{tpu_custom_call.1} parent=1 // pred_fallthru
      _
    // Predicated region
    $region6: #{tpu_custom_call.1} parent=1 // pred_check
      _
    $region7: #{tpu_custom_call.1} parent=1 // pred_check_branch
      %24 = sbr.rel (0) target = $region9
    $region8: #{tpu_custom_call.1} parent=1 // pred_region
      %s26 = ssub.s32 256, 256
      %27 = vsyncadd [#allocation7], %s26
      %s28 = sshll.u32 [#allocation6], 4
      %s29 = int_to_ptr.vmem [resolvable:$true] %s28
      %34 = dma.hbm_to_vmem [thread:$0]  %s1, 256, %s29, [#allocation7], 128, 128, 8
    $region9: #{tpu_custom_call.1} parent=1 // pred_fallthru
      _
    // Predicated region
    $region10: #{tpu_custom_call.1} parent=1 // pred_check
      _
    $region11: #{tpu_custom_call.1} parent=1 // pred_check_branch
      %36 = sbr.rel (0) target = $region13
    $region12: #{tpu_custom_call.1} parent=1 // pred_region
      _
    $region13: #{tpu_custom_call.1} parent=1 // pred_fallthru
      _
    // Predicated region
    $region14: #{tpu_custom_call.1} parent=1 // pred_check
      _
    $region15: #{tpu_custom_call.1} parent=1 // pred_check_branch
      %38 = sbr.rel (0) target = $region17
    $region16: #{tpu_custom_call.1} parent=1 // pred_region
      %39 = dma.done [#allocation4], 1024
    $region17: #{tpu_custom_call.1} parent=1 // pred_fallthru
      _
    // Predicated region
    $region18: #{tpu_custom_call.1} parent=1 // pred_check
      _
    $region19: #{tpu_custom_call.1} parent=1 // pred_check_branch
      %41 = sbr.rel (0) target = $region21
    $region20: #{tpu_custom_call.1} parent=1 // pred_region
      %42 = dma.done [#allocation7], 256
    $region21: #{tpu_custom_call.1} parent=1 // pred_fallthru
      _
    %p43 = scmp.eq.s32.totalorder 0, 0
    // Predicated region
    $region22: #{tpu_custom_call.1} parent=1 // pred_check
      %p44 = pneg %p43
    $region23: #{tpu_custom_call.1} parent=1 // pred_check_branch
      %46 = sbr.rel (%p44) target = $region25
    $region24: #{tpu_custom_call.1} parent=1 // pred_region
      %vm47 = vcmask 123904
      %48 = vst.msk [vmem:[#allocation2] sm:$0x3] %vm47, 0.0
    $region25: #{tpu_custom_call.1} parent=1 // pred_fallthru
      _
    %v49 = vld [vmem:[#allocation2] sm:$0x3]
    %v50 = vld [vmem:[#allocation3] sm:$0xff]
    %v51 = vld [vmem:[#allocation3 + $0x8] sm:$0xff]
    %v52 = vld [vmem:[#allocation3 + $0x10] sm:$0xff]
    %v53 = vld [vmem:[#allocation3 + $0x18] sm:$0xff]
    %v54 = vld [vmem:[#allocation3 + $0x20] sm:$0xff]
    %v55 = vld [vmem:[#allocation3 + $0x28] sm:$0xff]
    %v56 = vld [vmem:[#allocation3 + $0x30] sm:$0xff]
    %v57 = vld [vmem:[#allocation3 + $0x38] sm:$0xff]
    %v58 = vadd.f32 %v50, %v51
    %59 = vadd.xlane.f32.xlu0 %v58
    %v60 = vpop.xlane.xlu0 %59
    %v61 = vadd.f32 %v52, %v53
    %62 = vadd.xlane.f32.xlu0 %v61
    %v63 = vpop.xlane.xlu0 %62
    %v64 = vadd.f32 %v54, %v55
    %65 = vadd.xlane.f32.xlu0 %v64
    %v66 = vpop.xlane.xlu0 %65
    %v67 = vadd.f32 %v56, %v57
    %68 = vadd.xlane.f32.xlu0 %v67
    %v69 = vpop.xlane.xlu0 %68
    %v74 = vlaneseq
    %v75 = vand.u32 %v74, 127
    %v76 = vlaneseq
    %v77 = vshrl.u32 %v76, 7
    %v78 = vsub.s32 %v75, %v77
    %v79 = vrot.slane %v60, %v78
    %v80 = vadd.s32 %v75, 4294967288
    %v81 = vlaneseq
    %v82 = vshrl.u32 %v81, 7
    %v83 = vsub.s32 %v80, %v82
    %v84 = vrot.slane %v63, %v83
    %vm85 = vcmask 130112
    %v86 = vsel %vm85, %v84, %v79
    %v87 = vlaneseq
    %v88 = vshrl.u32 %v87, 7
    %v89 = vsub.s32 %v75, %v88
    %v90 = vrot.slane %v66, %v89
    %v91 = vlaneseq
    %v92 = vshrl.u32 %v91, 7
    %v93 = vsub.s32 %v80, %v92
    %v94 = vrot.slane %v69, %v93
    %v95 = vsel %vm85, %v94, %v90
    %vm96 = vcmask 1041409
    %v97 = vsel %vm96, %v95, %v86
    %v99 = vadd.f32 %v49, %v97
    %vm100 = vcmask 123904
    %101 = vst.msk [vmem:[#allocation2] sm:$0x3] %vm100, %v99
    // Predicated region
    $region26: #{tpu_custom_call.1} parent=1 // pred_check
      %p102 = pneg %p43
    $region27: #{tpu_custom_call.1} parent=1 // pred_check_branch
      %104 = sbr.rel (%p102) target = $region29
    $region28: #{tpu_custom_call.1} parent=1 // pred_region
      %v105 = vld [vmem:[#allocation2] sm:$0x3]
      %v106 = vld [vmem:[#allocation6] sm:$0xff]
      %v107 = vld [vmem:[#allocation6 + $0x8] sm:$0xff]
      %v108 = vld [vmem:[%s2] sm:$0x1]
      %v110 = vlaneseq
      %v111 = vshrl.u32 %v110, 7
      %v112 = vsub.s32 0, %v111
      %v113 = vrot.slane %v108, %v112
      %vm115 = vcmask 130048
      %v117 = vsel %vm115, %v105, 0
      %119 = vmatprep.subr.mxu0 0.0
      %120 = vmatpush1.msra.mxu0 0.0
      %121 = vmatprep.subr.mxu0 0.0
      %122 = vmatpush1.msra.mxu0 0.0
      %123 = vmatprep.subr.mxu0 0.0
      %124 = vmatpush1.msra.mxu0 0.0
      %125 = vmatprep.subr.mxu0 0.0
      %126 = vmatpush1.msra.mxu0 0.0
      %127 = vmatprep.subr.mxu0 0.0
      %128 = vmatpush1.msra.mxu0 0.0
      %129 = vmatprep.subr.mxu0 0.0
      %130 = vmatpush1.msra.mxu0 0.0
      %131 = vmatprep.subr.mxu0 0.0
      %132 = vmatpush1.msra.mxu0 0.0
      %133 = vmatprep.subr.mxu0 0.0
      %134 = vmatpush1.msra.mxu0 0.0
      %135 = vmatprep.subr.mxu0 0.0
      %136 = vmatpush1.msra.mxu0 0.0
      %137 = vmatprep.subr.mxu0 0.0
      %138 = vmatpush1.msra.mxu0 0.0
      %139 = vmatprep.subr.mxu0 0.0
      %140 = vmatpush1.msra.mxu0 0.0
      %141 = vmatprep.subr.mxu0 0.0
      %142 = vmatpush1.msra.mxu0 0.0
      %143 = vmatprep.subr.mxu0 0.0
      %144 = vmatpush1.msra.mxu0 0.0
      %145 = vmatprep.subr.mxu0 0.0
      %146 = vmatpush1.msra.mxu0 0.0
      %147 = vmatprep.subr.mxu0 0.0
      %148 = vmatpush1.msra.mxu0 %v107
      %149 = vmatprep.subr.mxu0 0.0
      %150 = vmatpush1.msra.mxu0 %v106
      %151 = vmatprep.subr.mxu0 0.0
      %152 = vmatpush2.msra.mxu0 0.0
      %153 = vmatprep.subr.mxu0 0.0
      %154 = vmatpush2.msra.mxu0 0.0
      %155 = vmatprep.subr.mxu0 0.0
      %156 = vmatpush2.msra.mxu0 0.0
      %157 = vmatprep.subr.mxu0 0.0
      %158 = vmatpush2.msra.mxu0 0.0
      %159 = vmatprep.subr.mxu0 0.0
      %160 = vmatpush2.msra.mxu0 0.0
      %161 = vmatprep.subr.mxu0 0.0
      %162 = vmatpush2.msra.mxu0 0.0
      %163 = vmatprep.subr.mxu0 0.0
      %164 = vmatpush2.msra.mxu0 0.0
      %165 = vmatprep.subr.mxu0 0.0
      %166 = vmatpush2.msra.mxu0 0.0
      %167 = vmatprep.subr.mxu0 0.0
      %168 = vmatpush2.msra.mxu0 0.0
      %169 = vmatprep.subr.mxu0 0.0
      %170 = vmatpush2.msra.mxu0 0.0
      %171 = vmatprep.subr.mxu0 0.0
      %172 = vmatpush2.msra.mxu0 0.0
      %173 = vmatprep.subr.mxu0 0.0
      %174 = vmatpush2.msra.mxu0 0.0
      %175 = vmatprep.subr.mxu0 0.0
      %176 = vmatpush2.msra.mxu0 0.0
      %177 = vmatprep.subr.mxu0 0.0
      %178 = vmatpush2.msra.mxu0 0.0
      %179 = vmatprep.subr.mxu0 0.0
      %180 = vmatpush2.msra.mxu0 0.0
      %181 = vmatprep.subr.mxu0 0.0
      %182 = vmatpush2.msra.mxu0 0.0
      %183 = vmatprep.mubr.f32.mxu0 0.0
      %184 = vmatmul.mubr.f32.gmra.mxu0 %v117
      %v185 = vpop.f32.mrf.mxu0
      %v186 = vadd.f32 %v113, %v185
      %v187 = vpop.f32.mrf.mxu0
      %188 = vdwg.mxu0
      %v189 = vtanh.pop %v186
      %190 = vst [vmem:[#allocation8] sm:$0x3] %v189
    $region29: #{tpu_custom_call.1} parent=1 // pred_fallthru
      _
    // Predicated region
    $region30: #{tpu_custom_call.1} parent=1 // pred_check
      _
    $region31: #{tpu_custom_call.1} parent=1 // pred_check_branch
      %192 = sbr.rel (0) target = $region33
    $region32: #{tpu_custom_call.1} parent=1 // pred_region
      %s194 = ssub.s32 32, 32
      %195 = vsyncadd [#allocation5], %s194
      %s197 = sshll.u32 [#allocation8], 4
      %s198 = int_to_ptr.vmem [resolvable:$true] %s197
      %200 = dma.vmem_to_hbm [thread:$0]  %s198, 32, %s3, [#allocation5]
    $region33: #{tpu_custom_call.1} parent=1 // pred_fallthru
      _
    // Predicated region
    $region34: #{tpu_custom_call.1} parent=1 // pred_check
      _
    $region35: #{tpu_custom_call.1} parent=1 // pred_check_branch
      %202 = sbr.rel (0) target = $region37
    $region36: #{tpu_custom_call.1} parent=1 // pred_region
      %203 = dma.done [#allocation5], 32
    $region37: #{tpu_custom_call.1} parent=1 // pred_fallthru
      _
    %204 = vsyncpa [#allocation4], 1
    %205 = vsyncpa [#allocation7], 1
    %206 = vsyncpa [#allocation5], 1

</llo_original>
